<compile_context>
chip_gen: v6e
topology: v6e:2x2x1
jax: 0.10.0
libtpu: 0.0.40
codegen_flags: <defaults>
</compile_context>

<pallas_src>
import jax
import jax.numpy as jnp
from jax.experimental import pallas as pl
from jax.experimental.pallas import tpu as pltpu

BN_EPS = 0.001

# Row layout of the packed (16, 128) vector slab.
_ROW_G_S, _ROW_B_S = 0, 1        # input-BN gamma/beta, state columns
_ROW_G_A, _ROW_B_A = 2, 3        # input-BN gamma/beta, action columns
_ROW_B1, _ROW_G1, _ROW_BE1 = 4, 5, 6    # layer-1 bias / BN gamma / BN beta (merged heads)
_ROW_B2, _ROW_G2, _ROW_BE2 = 7, 8, 9    # layer-2 bias / BN gamma / BN beta (merged heads)
_ROW_B3 = 10                            # layer-3 bias: lane0 = b3_q1, lane1 = b3_q2
_VEC_ROWS = 16


def _ru(n, m=8):
    return ((n + m - 1) // m) * m


# ----------------------------------------------------------------------------
# Fused kernel: whole Critic forward in one pallas_call
# ----------------------------------------------------------------------------
def _critic_kernel(s_ref, a_ref, w_ref, v_ref, o_ref):
    B, Sd = s_ref.shape
    Ad = a_ref.shape[1]
    inv_b = 1.0 / B

    # Static row offsets into the packed weight slab (must match packing).
    ra = _ru(Sd)
    r2 = ra + _ru(Ad)
    r3 = r2 + 128

    v = v_ref[...]                                   # (16, 128) row-vector slab

    def bn(y, gamma, beta):
        # Two-pass (centered) batch statistics: robust against catastrophic
        # cancellation when |mean| >> std (un-normalized RL inputs); biased
        # variance like PyTorch training-mode BatchNorm1d.  Output path is the
        # folded affine d * scale + beta.
        mean = jnp.sum(y, axis=0, keepdims=True) * inv_b
        d = y - mean
        var = jnp.sum(d * d, axis=0, keepdims=True) * inv_b
        scale = gamma * jax.lax.rsqrt(var + BN_EPS)
        return d * scale + beta

    # Shared input BatchNorm1d(D0), applied per column group (state | action)
    # so the (state, action) concat never materializes (in HBM or VMEM).
    xs = bn(s_ref[...], v[_ROW_G_S:_ROW_G_S + 1, :Sd], v[_ROW_B_S:_ROW_B_S + 1, :Sd])
    xa = bn(a_ref[...], v[_ROW_G_A:_ROW_G_A + 1, :Ad], v[_ROW_B_A:_ROW_B_A + 1, :Ad])

    # Layer 1 (merged heads): cols 0:32 = q1, 32:64 = q2, 64:128 = zero pad
    # (pad columns carry gamma=beta=bias=0 so they stay exactly zero).
    h = (jnp.dot(xs, w_ref[0:Sd, :], preferred_element_type=jnp.float32)
         + jnp.dot(xa, w_ref[ra:ra + Ad, :], preferred_element_type=jnp.float32)
         + v[_ROW_B1:_ROW_B1 + 1, :])
    h = bn(jnp.maximum(h, 0.0),
           v[_ROW_G1:_ROW_G1 + 1, :], v[_ROW_BE1:_ROW_BE1 + 1, :])

    # Layer 2: block-diagonal (128,128) weight -> q1 in cols 0:64, q2 in 64:128
    h = (jnp.dot(h, w_ref[r2:r2 + 128, :], preferred_element_type=jnp.float32)
         + v[_ROW_B2:_ROW_B2 + 1, :])
    h = bn(jnp.maximum(h, 0.0),
           v[_ROW_G2:_ROW_G2 + 1, :], v[_ROW_BE2:_ROW_BE2 + 1, :])

    # Layer 3: (128,128) weight with w3_q1 in col 0, w3_q2 in col 1.
    y = (jnp.dot(h, w_ref[r3:r3 + 128, :], preferred_element_type=jnp.float32)
         + v[_ROW_B3:_ROW_B3 + 1, :])
    x1 = y[:, 0:1]
    x2 = y[:, 1:2]
    spread = jnp.maximum(x2 - x1 * x1, 0.0) + 1e-15
    o_ref[...] = (x1 - 1.5 * jnp.sqrt(spread)).astype(o_ref.dtype)


def _full_spec(shape):
    # Block = full array => always layout-legal regardless of (8,128) tiling.
    return pl.BlockSpec(shape, lambda *_: (0,) * len(shape))


def _fused_critic_call(state, action, params):
    B, Sd = state.shape
    Ad = action.shape[1]
    operands = (state, action, params["w"], params["v"])

    # VMEM working-set estimate + guard (v7x has only 64 MiB of VMEM).
    op_bytes = sum(int(a.size) * a.dtype.itemsize for a in operands) + B * 4
    act_bytes = 16 * B * 128 * 4               # live (B, <=128) f32 temporaries
    est = 2 * op_bytes + act_bytes + (1 << 20)
    if est > (48 << 20):
        # TODO(synk): for batches this large, switch to a two-pass BN with a
        # grid over the batch instead of the fully-VMEM-resident path.
        raise ValueError(f"batch too large for fully-resident Critic kernel "
                         f"(~{est} bytes of VMEM needed)")
    vmem_limit = int(min(max(est, 16 << 20), 48 << 20))

    flops = int(2 * B * (Sd * 128 + Ad * 128 + 128 * 128 + 128 * 128))
    transcendentals = int(Sd + Ad + 128 + 128 + B)

    return pl.pallas_call(
        _critic_kernel,
        out_shape=jax.ShapeDtypeStruct((B, 1), jnp.float32),
        in_specs=[_full_spec(a.shape) for a in operands],
        out_specs=_full_spec((B, 1)),
        compiler_params=pltpu.CompilerParams(vmem_limit_bytes=vmem_limit),
        cost_estimate=pl.CostEstimate(flops=flops,
                                      transcendentals=transcendentals,
                                      bytes_accessed=int(op_bytes)),
    )(*operands)


@jax.jit
def critic_forward(params, state, action):
    """Critic.forward(state, action) -> expected_reward; one fused kernel."""
    return _fused_critic_call(state.astype(jnp.float32),
                              action.astype(jnp.float32), params)


# ----------------------------------------------------------------------------
# Parameter construction (matches Critic.__init__ + init_weights) + packing
# ----------------------------------------------------------------------------
def _xavier(key, fan_in, fan_out):
    limit = jnp.sqrt(6.0 / (fan_in + fan_out))
    return jax.random.uniform(key, (fan_in, fan_out), jnp.float32, -limit, limit)


def init_critic_params(state_dim, action_dim, key):
    sd, ad = state_dim, action_dim
    d0, h1, h2 = sd + ad, 32, 64
    assert sd <= 128 and ad <= 128, "state/action width must fit one 128-lane row"

    k = jax.random.split(key, 6)
    # Per-head weights stored (in, out); biases are zero (init_weights fills 0),
    # BN gamma=1 / beta=0 (fresh modules).
    w1 = jnp.stack([_xavier(k[0], d0, h1), _xavier(k[1], d0, h1)])   # (2, d0, 32)
    w2 = jnp.stack([_xavier(k[2], h1, h2), _xavier(k[3], h1, h2)])   # (2, 32, 64)
    w3 = jnp.stack([_xavier(k[4], h2, 1), _xavier(k[5], h2, 1)])     # (2, 64, 1)

    # ---- packed weight slab (rows x 128 lanes) ----------------------------
    ps, pa = _ru(sd), _ru(ad)
    r_a, r_2, r_3 = ps, ps + pa, ps + pa + 128
    wslab = jnp.zeros((r_3 + 128, 128), jnp.float32)
    w1m = jnp.concatenate([w1[0], w1[1]], axis=1)                    # (d0, 64)
    wslab = wslab.at[0:sd, 0:2 * h1].set(w1m[:sd])                   # W1 (state rows)
    wslab = wslab.at[r_a:r_a + ad, 0:2 * h1].set(w1m[sd:])           # W1 (action rows)
    wslab = wslab.at[r_2 + 0:r_2 + h1, 0:h2].set(w2[0])              # W2 q1 block
    wslab = wslab.at[r_2 + h1:r_2 + 2 * h1, h2:2 * h2].set(w2[1])    # W2 q2 block
    wslab = wslab.at[r_3 + 0:r_3 + h2, 0:1].set(w3[0])               # w3 q1 -> col 0
    wslab = wslab.at[r_3 + h2:r_3 + 2 * h2, 1:2].set(w3[1])          # w3 q2 -> col 1

    # ---- packed row-vector slab -------------------------------------------
    vec = jnp.zeros((_VEC_ROWS, 128), jnp.float32)
    vec = vec.at[_ROW_G_S, 0:sd].set(1.0)       # input BN gamma (state cols)
    vec = vec.at[_ROW_G_A, 0:ad].set(1.0)       # input BN gamma (action cols)
    vec = vec.at[_ROW_G1, 0:2 * h1].set(1.0)    # layer-1 BN gamma (pads stay 0)
    vec = vec.at[_ROW_G2, 0:2 * h2].set(1.0)    # layer-2 BN gamma
    # biases / betas / b3 are zero at init.

    params = {"w": wslab, "v": vec}
    raw = {"w1": w1, "w2": w2, "w3": w3}
    return params, raw


# ----------------------------------------------------------------------------
# Pure-JAX reference for a sanity check (fresh-init: bias=0, gamma=1, beta=0)
# ----------------------------------------------------------------------------
def critic_forward_ref(raw, state, action):
    hp = jax.lax.Precision.HIGHEST
    x = jnp.concatenate([state, action], axis=1).astype(jnp.float32)

    def bn(y):
        m = jnp.mean(y, axis=0, keepdims=True)
        var = jnp.mean((y - m) ** 2, axis=0, keepdims=True)
        return (y - m) / jnp.sqrt(var + BN_EPS)

    x = bn(x)
    heads = []
    for q in range(2):
        h = bn(jnp.maximum(jnp.dot(x, raw["w1"][q], precision=hp), 0.0))
        h = bn(jnp.maximum(jnp.dot(h, raw["w2"][q], precision=hp), 0.0))
        heads.append(jnp.dot(h, raw["w3"][q], precision=hp))
    x1, x2 = heads
    return x1 - 1.5 * jnp.sqrt(jnp.maximum(x2 - x1 * x1, 0.0) + 1e-15)


if __name__ == "__main__":
    state_dim, action_dim, batch = 24, 8, 8     # D0 = 32, dims = [32, 32, 64, 1]

    key = jax.random.PRNGKey(0)
    pkey, skey, akey = jax.random.split(key, 3)

    params, raw = init_critic_params(state_dim, action_dim, pkey)
    # Un-normalized state (non-zero mean) to exercise the BN robustness path.
    state = 10.0 + 2.0 * jax.random.normal(skey, (batch, state_dim), jnp.float32)
    action = jax.random.normal(akey, (batch, action_dim), jnp.float32)

    out = jax.block_until_ready(critic_forward(params, state, action))
    ref = critic_forward_ref(raw, state, action)

    assert out.shape == (batch, 1), out.shape
    assert jnp.allclose(out, ref, atol=2e-3, rtol=2e-3), (out, ref)

    print("KERNEL_OK")
</pallas_src>

<mosaic_0001>
module attributes {stable_mosaic.version = 11 : i64} {
  func.func @_critic_kernel(%arg0: memref<8x24xf32, #tpu.memory_space<vmem>>, %arg1: memref<8x8xf32, #tpu.memory_space<vmem>>, %arg2: memref<288x128xf32, #tpu.memory_space<vmem>>, %arg3: memref<16x128xf32, #tpu.memory_space<vmem>>, %arg4: memref<8x1xf32, #tpu.memory_space<vmem>>) attributes {dimension_semantics = [], scalar_prefetch = 0 : i64, scratch_operands = 0 : i64, tpu.core_type = #tpu.core_type<tc>} {
    %c0 = arith.constant 0 : index
    %c0_0 = arith.constant 0 : index
    %0 = vector.load %arg3[%c0, %c0_0] : memref<16x128xf32, #tpu.memory_space<vmem>>, vector<16x128xf32>
    %c0_1 = arith.constant 0 : index
    %c0_2 = arith.constant 0 : index
    %1 = vector.load %arg0[%c0_1, %c0_2] : memref<8x24xf32, #tpu.memory_space<vmem>>, vector<8x24xf32>
    %2 = vector.extract_strided_slice %0 {offsets = [0, 0], sizes = [1, 24], strides = [1, 1]} : vector<16x128xf32> to vector<1x24xf32>
    %3 = vector.extract_strided_slice %0 {offsets = [1, 0], sizes = [1, 24], strides = [1, 1]} : vector<16x128xf32> to vector<1x24xf32>
    %cst = arith.constant dense<0.000000e+00> : vector<24xf32>
    %4 = vector.multi_reduction <add>, %1, %cst [0] : vector<8x24xf32> to vector<24xf32>
    %5 = vector.shape_cast %4 : vector<24xf32> to vector<1x24xf32>
    %cst_3 = arith.constant 1.250000e-01 : f32
    %6 = vector.broadcast %cst_3 : f32 to vector<1x24xf32>
    %7 = arith.mulf %5, %6 : vector<1x24xf32>
    %8 = vector.broadcast %7 : vector<1x24xf32> to vector<8x24xf32>
    %9 = arith.subf %1, %8 : vector<8x24xf32>
    %10 = arith.mulf %9, %9 : vector<8x24xf32>
    %cst_4 = arith.constant dense<0.000000e+00> : vector<24xf32>
    %11 = vector.multi_reduction <add>, %10, %cst_4 [0] : vector<8x24xf32> to vector<24xf32>
    %12 = vector.shape_cast %11 : vector<24xf32> to vector<1x24xf32>
    %cst_5 = arith.constant 1.250000e-01 : f32
    %13 = vector.broadcast %cst_5 : f32 to vector<1x24xf32>
    %14 = arith.mulf %12, %13 : vector<1x24xf32>
    %cst_6 = arith.constant 1.000000e-03 : f32
    %15 = vector.broadcast %cst_6 : f32 to vector<1x24xf32>
    %16 = arith.addf %14, %15 : vector<1x24xf32>
    %17 = math.rsqrt %16 : vector<1x24xf32>
    %18 = arith.mulf %2, %17 : vector<1x24xf32>
    %19 = vector.broadcast %18 : vector<1x24xf32> to vector<8x24xf32>
    %20 = arith.mulf %9, %19 : vector<8x24xf32>
    %21 = vector.broadcast %3 : vector<1x24xf32> to vector<8x24xf32>
    %22 = arith.addf %20, %21 : vector<8x24xf32>
    %c0_7 = arith.constant 0 : index
    %c0_8 = arith.constant 0 : index
    %23 = vector.load %arg1[%c0_7, %c0_8] : memref<8x8xf32, #tpu.memory_space<vmem>>, vector<8x8xf32>
    %24 = vector.extract_strided_slice %0 {offsets = [2, 0], sizes = [1, 8], strides = [1, 1]} : vector<16x128xf32> to vector<1x8xf32>
    %25 = vector.extract_strided_slice %0 {offsets = [3, 0], sizes = [1, 8], strides = [1, 1]} : vector<16x128xf32> to vector<1x8xf32>
    %cst_9 = arith.constant dense<0.000000e+00> : vector<8xf32>
    %26 = vector.multi_reduction <add>, %23, %cst_9 [0] : vector<8x8xf32> to vector<8xf32>
    %27 = vector.shape_cast %26 : vector<8xf32> to vector<1x8xf32>
    %cst_10 = arith.constant 1.250000e-01 : f32
    %28 = vector.broadcast %cst_10 : f32 to vector<1x8xf32>
    %29 = arith.mulf %27, %28 : vector<1x8xf32>
    %30 = vector.broadcast %29 : vector<1x8xf32> to vector<8x8xf32>
    %31 = arith.subf %23, %30 : vector<8x8xf32>
    %32 = arith.mulf %31, %31 : vector<8x8xf32>
    %cst_11 = arith.constant dense<0.000000e+00> : vector<8xf32>
    %33 = vector.multi_reduction <add>, %32, %cst_11 [0] : vector<8x8xf32> to vector<8xf32>
    %34 = vector.shape_cast %33 : vector<8xf32> to vector<1x8xf32>
    %cst_12 = arith.constant 1.250000e-01 : f32
    %35 = vector.broadcast %cst_12 : f32 to vector<1x8xf32>
    %36 = arith.mulf %34, %35 : vector<1x8xf32>
    %cst_13 = arith.constant 1.000000e-03 : f32
    %37 = vector.broadcast %cst_13 : f32 to vector<1x8xf32>
    %38 = arith.addf %36, %37 : vector<1x8xf32>
    %39 = math.rsqrt %38 : vector<1x8xf32>
    %40 = arith.mulf %24, %39 : vector<1x8xf32>
    %41 = vector.broadcast %40 : vector<1x8xf32> to vector<8x8xf32>
    %42 = arith.mulf %31, %41 : vector<8x8xf32>
    %43 = vector.broadcast %25 : vector<1x8xf32> to vector<8x8xf32>
    %44 = arith.addf %42, %43 : vector<8x8xf32>
    %c0_14 = arith.constant 0 : index
    %c0_15 = arith.constant 0 : index
    %45 = vector.load %arg2[%c0_14, %c0_15] : memref<288x128xf32, #tpu.memory_space<vmem>>, vector<24x128xf32>
    %cst_16 = arith.constant dense<0.000000e+00> : vector<8x128xf32>
    %46 = tpu.matmul %22, %45, %cst_16 {dimension_numbers = #tpu.dot_dimension_numbers<[1], [0], [0], [1], [0, 0, 1, 1], [], []>} : vector<8x24xf32>, vector<24x128xf32>, vector<8x128xf32> -> vector<8x128xf32>
    %c24 = arith.constant 24 : index
    %c0_17 = arith.constant 0 : index
    %47 = vector.load %arg2[%c24, %c0_17] : memref<288x128xf32, #tpu.memory_space<vmem>>, vector<8x128xf32>
    %cst_18 = arith.constant dense<0.000000e+00> : vector<8x128xf32>
    %48 = tpu.matmul %44, %47, %cst_18 {dimension_numbers = #tpu.dot_dimension_numbers<[1], [0], [0], [1], [0, 0, 1, 1], [], []>} : vector<8x8xf32>, vector<8x128xf32>, vector<8x128xf32> -> vector<8x128xf32>
    %49 = arith.addf %46, %48 : vector<8x128xf32>
    %50 = vector.extract_strided_slice %0 {offsets = [4, 0], sizes = [1, 128], strides = [1, 1]} : vector<16x128xf32> to vector<1x128xf32>
    %51 = vector.broadcast %50 : vector<1x128xf32> to vector<8x128xf32>
    %52 = arith.addf %49, %51 : vector<8x128xf32>
    %cst_19 = arith.constant 0.000000e+00 : f32
    %53 = vector.broadcast %cst_19 : f32 to vector<8x128xf32>
    %54 = arith.maximumf %52, %53 : vector<8x128xf32>
    %55 = vector.extract_strided_slice %0 {offsets = [5, 0], sizes = [1, 128], strides = [1, 1]} : vector<16x128xf32> to vector<1x128xf32>
    %56 = vector.extract_strided_slice %0 {offsets = [6, 0], sizes = [1, 128], strides = [1, 1]} : vector<16x128xf32> to vector<1x128xf32>
    %cst_20 = arith.constant dense<0.000000e+00> : vector<128xf32>
    %57 = vector.multi_reduction <add>, %54, %cst_20 [0] : vector<8x128xf32> to vector<128xf32>
    %58 = vector.shape_cast %57 : vector<128xf32> to vector<1x128xf32>
    %cst_21 = arith.constant 1.250000e-01 : f32
    %59 = vector.broadcast %cst_21 : f32 to vector<1x128xf32>
    %60 = arith.mulf %58, %59 : vector<1x128xf32>
    %61 = vector.broadcast %60 : vector<1x128xf32> to vector<8x128xf32>
    %62 = arith.subf %54, %61 : vector<8x128xf32>
    %63 = arith.mulf %62, %62 : vector<8x128xf32>
    %cst_22 = arith.constant dense<0.000000e+00> : vector<128xf32>
    %64 = vector.multi_reduction <add>, %63, %cst_22 [0] : vector<8x128xf32> to vector<128xf32>
    %65 = vector.shape_cast %64 : vector<128xf32> to vector<1x128xf32>
    %cst_23 = arith.constant 1.250000e-01 : f32
    %66 = vector.broadcast %cst_23 : f32 to vector<1x128xf32>
    %67 = arith.mulf %65, %66 : vector<1x128xf32>
    %cst_24 = arith.constant 1.000000e-03 : f32
    %68 = vector.broadcast %cst_24 : f32 to vector<1x128xf32>
    %69 = arith.addf %67, %68 : vector<1x128xf32>
    %70 = math.rsqrt %69 : vector<1x128xf32>
    %71 = arith.mulf %55, %70 : vector<1x128xf32>
    %72 = vector.broadcast %71 : vector<1x128xf32> to vector<8x128xf32>
    %73 = arith.mulf %62, %72 : vector<8x128xf32>
    %74 = vector.broadcast %56 : vector<1x128xf32> to vector<8x128xf32>
    %75 = arith.addf %73, %74 : vector<8x128xf32>
    %c32 = arith.constant 32 : index
    %c0_25 = arith.constant 0 : index
    %76 = vector.load %arg2[%c32, %c0_25] : memref<288x128xf32, #tpu.memory_space<vmem>>, vector<128x128xf32>
    %cst_26 = arith.constant dense<0.000000e+00> : vector<8x128xf32>
    %77 = tpu.matmul %75, %76, %cst_26 {dimension_numbers = #tpu.dot_dimension_numbers<[1], [0], [0], [1], [0, 0, 1, 1], [], []>} : vector<8x128xf32>, vector<128x128xf32>, vector<8x128xf32> -> vector<8x128xf32>
    %78 = vector.extract_strided_slice %0 {offsets = [7, 0], sizes = [1, 128], strides = [1, 1]} : vector<16x128xf32> to vector<1x128xf32>
    %79 = vector.broadcast %78 : vector<1x128xf32> to vector<8x128xf32>
    %80 = arith.addf %77, %79 : vector<8x128xf32>
    %cst_27 = arith.constant 0.000000e+00 : f32
    %81 = vector.broadcast %cst_27 : f32 to vector<8x128xf32>
    %82 = arith.maximumf %80, %81 : vector<8x128xf32>
    %83 = vector.extract_strided_slice %0 {offsets = [8, 0], sizes = [1, 128], strides = [1, 1]} : vector<16x128xf32> to vector<1x128xf32>
    %84 = vector.extract_strided_slice %0 {offsets = [9, 0], sizes = [1, 128], strides = [1, 1]} : vector<16x128xf32> to vector<1x128xf32>
    %cst_28 = arith.constant dense<0.000000e+00> : vector<128xf32>
    %85 = vector.multi_reduction <add>, %82, %cst_28 [0] : vector<8x128xf32> to vector<128xf32>
    %86 = vector.shape_cast %85 : vector<128xf32> to vector<1x128xf32>
    %cst_29 = arith.constant 1.250000e-01 : f32
    %87 = vector.broadcast %cst_29 : f32 to vector<1x128xf32>
    %88 = arith.mulf %86, %87 : vector<1x128xf32>
    %89 = vector.broadcast %88 : vector<1x128xf32> to vector<8x128xf32>
    %90 = arith.subf %82, %89 : vector<8x128xf32>
    %91 = arith.mulf %90, %90 : vector<8x128xf32>
    %cst_30 = arith.constant dense<0.000000e+00> : vector<128xf32>
    %92 = vector.multi_reduction <add>, %91, %cst_30 [0] : vector<8x128xf32> to vector<128xf32>
    %93 = vector.shape_cast %92 : vector<128xf32> to vector<1x128xf32>
    %cst_31 = arith.constant 1.250000e-01 : f32
    %94 = vector.broadcast %cst_31 : f32 to vector<1x128xf32>
    %95 = arith.mulf %93, %94 : vector<1x128xf32>
    %cst_32 = arith.constant 1.000000e-03 : f32
    %96 = vector.broadcast %cst_32 : f32 to vector<1x128xf32>
    %97 = arith.addf %95, %96 : vector<1x128xf32>
    %98 = math.rsqrt %97 : vector<1x128xf32>
    %99 = arith.mulf %83, %98 : vector<1x128xf32>
    %100 = vector.broadcast %99 : vector<1x128xf32> to vector<8x128xf32>
    %101 = arith.mulf %90, %100 : vector<8x128xf32>
    %102 = vector.broadcast %84 : vector<1x128xf32> to vector<8x128xf32>
    %103 = arith.addf %101, %102 : vector<8x128xf32>
    %c160 = arith.constant 160 : index
    %c0_33 = arith.constant 0 : index
    %104 = vector.load %arg2[%c160, %c0_33] : memref<288x128xf32, #tpu.memory_space<vmem>>, vector<128x128xf32>
    %cst_34 = arith.constant dense<0.000000e+00> : vector<8x128xf32>
    %105 = tpu.matmul %103, %104, %cst_34 {dimension_numbers = #tpu.dot_dimension_numbers<[1], [0], [0], [1], [0, 0, 1, 1], [], []>} : vector<8x128xf32>, vector<128x128xf32>, vector<8x128xf32> -> vector<8x128xf32>
    %106 = vector.extract_strided_slice %0 {offsets = [10, 0], sizes = [1, 128], strides = [1, 1]} : vector<16x128xf32> to vector<1x128xf32>
    %107 = vector.broadcast %106 : vector<1x128xf32> to vector<8x128xf32>
    %108 = arith.addf %105, %107 : vector<8x128xf32>
    %109 = vector.extract_strided_slice %108 {offsets = [0, 0], sizes = [8, 1], strides = [1, 1]} : vector<8x128xf32> to vector<8x1xf32>
    %110 = vector.extract_strided_slice %108 {offsets = [0, 1], sizes = [8, 1], strides = [1, 1]} : vector<8x128xf32> to vector<8x1xf32>
    %111 = arith.mulf %109, %109 : vector<8x1xf32>
    %112 = arith.subf %110, %111 : vector<8x1xf32>
    %cst_35 = arith.constant 0.000000e+00 : f32
    %113 = vector.broadcast %cst_35 : f32 to vector<8x1xf32>
    %114 = arith.maximumf %112, %113 : vector<8x1xf32>
    %cst_36 = arith.constant 1.000000e-15 : f32
    %115 = vector.broadcast %cst_36 : f32 to vector<8x1xf32>
    %116 = arith.addf %114, %115 : vector<8x1xf32>
    %117 = math.sqrt %116 : vector<8x1xf32>
    %cst_37 = arith.constant 1.500000e+00 : f32
    %118 = vector.broadcast %cst_37 : f32 to vector<8x1xf32>
    %119 = arith.mulf %118, %117 : vector<8x1xf32>
    %120 = arith.subf %109, %119 : vector<8x1xf32>
    %c0_38 = arith.constant 0 : index
    %c0_39 = arith.constant 0 : index
    %121 = vector.load %arg4[%c0_38, %c0_39] : memref<8x1xf32, #tpu.memory_space<vmem>>, vector<8x1xf32>
    tpu.vector_store %arg4[%c0_38, %c0_39], %120 {strides = array<i32>} : memref<8x1xf32, #tpu.memory_space<vmem>>, vector<8x1xf32>,
    return
  }
}

</mosaic_0001>

<llo_original>
// kernel: critic_forward.1
$region0: #{critic_forward.1}
  #allocation0 [shape = 'u32[]', space=smem, size = 0x4, offset = 0x4, fixed_abs, tag = 'smem constant byte address 0x4 - core index']
  #allocation1 [shape = 'u32[144,128]{1,0:T(1,128)}', space=vmem, size = 0x12000, scoped, tag = 'internal scratch']
  %s0 = inlined_call_operand.hbm [shape: f32[8,24], index: 0, kind: input, shape index: {}]
  %s1 = inlined_call_operand.hbm [shape: f32[8,8], index: 1, kind: input, shape index: {}]
  %s2 = inlined_call_operand.hbm [shape: f32[288,128], index: 2, kind: input, shape index: {}]
  %s3 = inlined_call_operand.hbm [shape: f32[16,128], index: 3, kind: input, shape index: {}]
  %s4 = inlined_call_operand.vmem [shape: f32[8,1], index: 4, kind: output, shape index: {}]
  %s5 = sld [smem:[#allocation0]]
  $region42: #{critic_forward.1} parent=0
    _
  %s7 = ssub.s32 1, %s5
  %s8 = scalar_select 0, %s7, %s5
  $region1: #{critic_forward.1} parent=0
    #allocation2 [shape = 'u8[4096]{0}', space=vmem, size = 0x1000, scoped, tag = 'input window, operand 0, single buffered']
    #allocation3 [shape = 's32[1]{0}', space=sflag, size = 0x4, scoped, tag = 'scoped memory for critic_forward.1']
    #allocation4 [shape = 'u8[4096]{0}', space=vmem, size = 0x1000, scoped, tag = 'input window, operand 1, single buffered']
    #allocation5 [shape = 's32[1]{0}', space=sflag, size = 0x4, scoped, tag = 'scoped memory for critic_forward.1']
    #allocation6 [shape = 'u8[147456]{0}', space=vmem, size = 0x24000, scoped, tag = 'input window, operand 2, single buffered']
    #allocation7 [shape = 'u8[8192]{0}', space=vmem, size = 0x2000, scoped, tag = 'input window, operand 3, single buffered']
    #allocation8 [shape = 's32[1]{0}', space=sflag, size = 0x4, scoped, tag = 'scoped memory for critic_forward.1']
    %9 = vsyncpa [#allocation3], 0
    %10 = vsyncpa [#allocation5], 0
    %11 = vsyncpa [#allocation8], 0
    // Predicated region
    $region2: #{critic_forward.1} parent=1 // pred_check
      _
    $region3: #{critic_forward.1} parent=1 // pred_check_branch
      %13 = sbr.rel (0) target = $region5
    $region4: #{critic_forward.1} parent=1 // pred_region
      %s15 = ssub.s32 128, 128
      %16 = vsyncadd [#allocation3], %s15
      %s18 = sshll.u32 [#allocation2], 4
      %s19 = int_to_ptr.vmem [resolvable:$true] %s18
      %21 = dma.hbm_to_vmem [thread:$0]  %s0, 128, %s19, [#allocation3]
    $region5: #{critic_forward.1} parent=1 // pred_fallthru
      _
    // Predicated region
    $region6: #{critic_forward.1} parent=1 // pred_check
      _
    $region7: #{critic_forward.1} parent=1 // pred_check_branch
      %23 = sbr.rel (0) target = $region9
    $region8: #{critic_forward.1} parent=1 // pred_region
      %s25 = ssub.s32 128, 128
      %26 = vsyncadd [#allocation5], %s25
      %s28 = sshll.u32 [#allocation4], 4
      %s29 = int_to_ptr.vmem [resolvable:$true] %s28
      %31 = dma.hbm_to_vmem [thread:$0]  %s1, 128, %s29, [#allocation5]
    $region9: #{critic_forward.1} parent=1 // pred_fallthru
      _
    // Predicated region
    $region10: #{critic_forward.1} parent=1 // pred_check
      _
    $region11: #{critic_forward.1} parent=1 // pred_check_branch
      %33 = sbr.rel (0) target = $region13
    $region12: #{critic_forward.1} parent=1 // pred_region
      %s35 = ssub.s32 4608, 4608
      %36 = vsyncadd [#allocation5], %s35
      %s37 = sshll.u32 [#allocation6], 4
      %s38 = int_to_ptr.vmem [resolvable:$true] %s37
      %43 = dma.hbm_to_vmem [thread:$0]  %s2, 4608, %s38, [#allocation5], 128, 128, 8
    $region13: #{critic_forward.1} parent=1 // pred_fallthru
      _
    // Predicated region
    $region14: #{critic_forward.1} parent=1 // pred_check
      _
    $region15: #{critic_forward.1} parent=1 // pred_check_branch
      %45 = sbr.rel (0) target = $region17
    $region16: #{critic_forward.1} parent=1 // pred_region
      %s47 = ssub.s32 256, 256
      %48 = vsyncadd [#allocation8], %s47
      %s49 = sshll.u32 [#allocation7], 4
      %s50 = int_to_ptr.vmem [resolvable:$true] %s49
      %55 = dma.hbm_to_vmem [thread:$0]  %s3, 256, %s50, [#allocation8], 128, 128, 8
    $region17: #{critic_forward.1} parent=1 // pred_fallthru
      _
    // Predicated region
    $region18: #{critic_forward.1} parent=1 // pred_check
      _
    $region19: #{critic_forward.1} parent=1 // pred_check_branch
      %57 = sbr.rel (0) target = $region21
    $region20: #{critic_forward.1} parent=1 // pred_region
      %58 = dma.done [#allocation3], 128
    $region21: #{critic_forward.1} parent=1 // pred_fallthru
      _
    // Predicated region
    $region22: #{critic_forward.1} parent=1 // pred_check
      _
    $region23: #{critic_forward.1} parent=1 // pred_check_branch
      %60 = sbr.rel (0) target = $region25
    $region24: #{critic_forward.1} parent=1 // pred_region
      %61 = dma.done [#allocation5], 128
    $region25: #{critic_forward.1} parent=1 // pred_fallthru
      _
    // Predicated region
    $region26: #{critic_forward.1} parent=1 // pred_check
      _
    $region27: #{critic_forward.1} parent=1 // pred_check_branch
      %63 = sbr.rel (0) target = $region29
    $region28: #{critic_forward.1} parent=1 // pred_region
      %64 = dma.done [#allocation5], 4608
    $region29: #{critic_forward.1} parent=1 // pred_fallthru
      _
    // Predicated region
    $region30: #{critic_forward.1} parent=1 // pred_check
      _
    $region31: #{critic_forward.1} parent=1 // pred_check_branch
      %66 = sbr.rel (0) target = $region33
    $region32: #{critic_forward.1} parent=1 // pred_region
      %67 = dma.done [#allocation8], 256
    $region33: #{critic_forward.1} parent=1 // pred_fallthru
      _
    %v68 = vld [vmem:[#allocation7] sm:$0xff]
    %v69 = vld [vmem:[#allocation7 + $0x8] sm:$0xff]
    %v70 = vld [vmem:[#allocation2] sm:$0xff]
    %vm71 = vcmask 195584
    %v72 = vsel %vm71, %v70, 0.0
    %v73 = vrot.slane %v72, 4
    %v74 = vadd.f32 %v72, %v73
    %v75 = vrot.slane %v74, 2
    %v76 = vadd.f32 %v74, %v75
    %v77 = vrot.slane %v76, 1
    %v78 = vadd.f32 %v76, %v77
    %v79 = vmul.f32 %v78, 0.125
    %v80 = vsub.f32 %v70, %v79
    %v81 = vmul.f32 %v80, %v80
    %v82 = vsel %vm71, %v81, 0.0
    %v83 = vrot.slane %v82, 4
    %v84 = vadd.f32 %v82, %v83
    %v85 = vrot.slane %v84, 2
    %v86 = vadd.f32 %v84, %v85
    %v87 = vrot.slane %v86, 1
    %v88 = vadd.f32 %v86, %v87
    %v89 = vmul.f32 %v88, 0.125
    %v90 = vadd.f32 %v89, 0.001
    %v91 = vrsqrt.pop %v90
    %v92 = vmul.f32 %v68, %v91
    %v93 = vlaneseq
    %v94 = vshrl.u32 %v93, 7
    %v95 = vsub.s32 0, %v94
    %v96 = vrot.slane %v92, %v95
    %v97 = vmul.f32 %v80, %v96
    %v98 = vlaneseq
    %v99 = vshrl.u32 %v98, 7
    %v100 = vsub.s32 1, %v99
    %v101 = vrot.slane %v68, %v100
    %v102 = vadd.f32 %v97, %v101
    %v103 = vld [vmem:[#allocation4] sm:$0xff]
    %vm104 = vcmask 64512
    %v105 = vsel %vm104, %v103, 0.0
    %v106 = vrot.slane %v105, 4
    %v107 = vadd.f32 %v105, %v106
    %v108 = vrot.slane %v107, 2
    %v109 = vadd.f32 %v107, %v108
    %v110 = vrot.slane %v109, 1
    %v111 = vadd.f32 %v109, %v110
    %v112 = vmul.f32 %v111, 0.125
    %v113 = vsub.f32 %v103, %v112
    %v114 = vmul.f32 %v113, %v113
    %v115 = vsel %vm104, %v114, 0.0
    %v116 = vrot.slane %v115, 4
    %v117 = vadd.f32 %v115, %v116
    %v118 = vrot.slane %v117, 2
    %v119 = vadd.f32 %v117, %v118
    %v120 = vrot.slane %v119, 1
    %v121 = vadd.f32 %v119, %v120
    %v122 = vmul.f32 %v121, 0.125
    %v123 = vadd.f32 %v122, 0.001
    %v124 = vrsqrt.pop %v123
    %v125 = vmul.f32 %v68, %v124
    %v126 = vlaneseq
    %v127 = vshrl.u32 %v126, 7
    %v128 = vsub.s32 2, %v127
    %v129 = vrot.slane %v125, %v128
    %v130 = vmul.f32 %v113, %v129
    %v131 = vlaneseq
    %v132 = vshrl.u32 %v131, 7
    %v133 = vsub.s32 3, %v132
    %v134 = vrot.slane %v68, %v133
    %v135 = vadd.f32 %v130, %v134
    %v136 = vld [vmem:[#allocation6] sm:$0xff]
    %v137 = vld [vmem:[#allocation6 + $0x8] sm:$0xff]
    %v138 = vld [vmem:[#allocation6 + $0x10] sm:$0xff]
    %v139 = vld [vmem:[#allocation6 + $0x18] sm:$0xff]
    %v141 = vsel %vm104, %v135, 0
    %143 = vmatprep.subr.mxu0 0.0
    %144 = vmatpush1.msra.mxu0 0.0
    %145 = vmatprep.subr.mxu0 0.0
    %146 = vmatpush1.msra.mxu0 0.0
    %147 = vmatprep.subr.mxu0 0.0
    %148 = vmatpush1.msra.mxu0 0.0
    %149 = vmatprep.subr.mxu0 0.0
    %150 = vmatpush1.msra.mxu0 0.0
    %151 = vmatprep.subr.mxu0 0.0
    %152 = vmatpush1.msra.mxu0 0.0
    %153 = vmatprep.subr.mxu0 0.0
    %154 = vmatpush1.msra.mxu0 0.0
    %155 = vmatprep.subr.mxu0 0.0
    %156 = vmatpush1.msra.mxu0 0.0
    %157 = vmatprep.subr.mxu0 0.0
    %158 = vmatpush1.msra.mxu0 0.0
    %159 = vmatprep.subr.mxu0 0.0
    %160 = vmatpush1.msra.mxu0 0.0
    %161 = vmatprep.subr.mxu0 0.0
    %162 = vmatpush1.msra.mxu0 0.0
    %163 = vmatprep.subr.mxu0 0.0
    %164 = vmatpush1.msra.mxu0 0.0
    %165 = vmatprep.subr.mxu0 0.0
    %166 = vmatpush1.msra.mxu0 0.0
    %167 = vmatprep.subr.mxu0 0.0
    %168 = vmatpush1.msra.mxu0 0.0
    %169 = vmatprep.subr.mxu0 0.0
    %170 = vmatpush1.msra.mxu0 0.0
    %171 = vmatprep.subr.mxu0 0.0
    %172 = vmatpush1.msra.mxu0 0.0
    %173 = vmatprep.subr.mxu0 0.0
    %174 = vmatpush1.msra.mxu0 %v139
    %175 = vmatprep.subr.mxu0 0.0
    %176 = vmatpush2.msra.mxu0 0.0
    %177 = vmatprep.subr.mxu0 0.0
    %178 = vmatpush2.msra.mxu0 0.0
    %179 = vmatprep.subr.mxu0 0.0
    %180 = vmatpush2.msra.mxu0 0.0
    %181 = vmatprep.subr.mxu0 0.0
    %182 = vmatpush2.msra.mxu0 0.0
    %183 = vmatprep.subr.mxu0 0.0
    %184 = vmatpush2.msra.mxu0 0.0
    %185 = vmatprep.subr.mxu0 0.0
    %186 = vmatpush2.msra.mxu0 0.0
    %187 = vmatprep.subr.mxu0 0.0
    %188 = vmatpush2.msra.mxu0 0.0
    %189 = vmatprep.subr.mxu0 0.0
    %190 = vmatpush2.msra.mxu0 0.0
    %191 = vmatprep.subr.mxu0 0.0
    %192 = vmatpush2.msra.mxu0 0.0
    %193 = vmatprep.subr.mxu0 0.0
    %194 = vmatpush2.msra.mxu0 0.0
    %195 = vmatprep.subr.mxu0 0.0
    %196 = vmatpush2.msra.mxu0 0.0
    %197 = vmatprep.subr.mxu0 0.0
    %198 = vmatpush2.msra.mxu0 0.0
    %199 = vmatprep.subr.mxu0 0.0
    %200 = vmatpush2.msra.mxu0 0.0
    %201 = vmatprep.subr.mxu0 0.0
    %202 = vmatpush2.msra.mxu0 0.0
    %203 = vmatprep.subr.mxu0 0.0
    %204 = vmatpush2.msra.mxu0 0.0
    %205 = vmatprep.subr.mxu0 0.0
    %206 = vmatpush2.msra.mxu0 0.0
    %207 = vmatprep.mubr.f32.mxu0 0.0
    %208 = vmatmul.mubr.f32.gmra.mxu0 %v141
    %v209 = vpop.f32.mrf.mxu0
    %v210 = vadd.f32 0.0, %v209
    %v211 = vpop.f32.mrf.mxu0
    %212 = vdwg.mxu0
    %v214 = vsel %vm71, %v102, 0
    %216 = vmatprep.subr.mxu0 0.0
    %217 = vmatpush1.msra.mxu0 0.0
    %218 = vmatprep.subr.mxu0 0.0
    %219 = vmatpush1.msra.mxu0 0.0
    %220 = vmatprep.subr.mxu0 0.0
    %221 = vmatpush1.msra.mxu0 0.0
    %222 = vmatprep.subr.mxu0 0.0
    %223 = vmatpush1.msra.mxu0 0.0
    %224 = vmatprep.subr.mxu0 0.0
    %225 = vmatpush1.msra.mxu0 0.0
    %226 = vmatprep.subr.mxu0 0.0
    %227 = vmatpush1.msra.mxu0 0.0
    %228 = vmatprep.subr.mxu0 0.0
    %229 = vmatpush1.msra.mxu0 0.0
    %230 = vmatprep.subr.mxu0 0.0
    %231 = vmatpush1.msra.mxu0 0.0
    %232 = vmatprep.subr.mxu0 0.0
    %233 = vmatpush1.msra.mxu0 0.0
    %234 = vmatprep.subr.mxu0 0.0
    %235 = vmatpush1.msra.mxu0 0.0
    %236 = vmatprep.subr.mxu0 0.0
    %237 = vmatpush1.msra.mxu0 0.0
    %238 = vmatprep.subr.mxu0 0.0
    %239 = vmatpush1.msra.mxu0 0.0
    %240 = vmatprep.subr.mxu0 0.0
    %241 = vmatpush1.msra.mxu0 0.0
    %242 = vmatprep.subr.mxu0 0.0
    %243 = vmatpush1.msra.mxu0 %v138
    %244 = vmatprep.subr.mxu0 0.0
    %245 = vmatpush1.msra.mxu0 %v137
    %246 = vmatprep.subr.mxu0 0.0
    %247 = vmatpush1.msra.mxu0 %v136
    %248 = vmatprep.subr.mxu0 0.0
    %249 = vmatpush2.msra.mxu0 0.0
    %250 = vmatprep.subr.mxu0 0.0
    %251 = vmatpush2.msra.mxu0 0.0
    %252 = vmatprep.subr.mxu0 0.0
    %253 = vmatpush2.msra.mxu0 0.0
    %254 = vmatprep.subr.mxu0 0.0
    %255 = vmatpush2.msra.mxu0 0.0
    %256 = vmatprep.subr.mxu0 0.0
    %257 = vmatpush2.msra.mxu0 0.0
    %258 = vmatprep.subr.mxu0 0.0
    %259 = vmatpush2.msra.mxu0 0.0
    %260 = vmatprep.subr.mxu0 0.0
    %261 = vmatpush2.msra.mxu0 0.0
    %262 = vmatprep.subr.mxu0 0.0
    %263 = vmatpush2.msra.mxu0 0.0
    %264 = vmatprep.subr.mxu0 0.0
    %265 = vmatpush2.msra.mxu0 0.0
    %266 = vmatprep.subr.mxu0 0.0
    %267 = vmatpush2.msra.mxu0 0.0
    %268 = vmatprep.subr.mxu0 0.0
    %269 = vmatpush2.msra.mxu0 0.0
    %270 = vmatprep.subr.mxu0 0.0
    %271 = vmatpush2.msra.mxu0 0.0
    %272 = vmatprep.subr.mxu0 0.0
    %273 = vmatpush2.msra.mxu0 0.0
    %274 = vmatprep.subr.mxu0 0.0
    %275 = vmatpush2.msra.mxu0 0.0
    %276 = vmatprep.subr.mxu0 0.0
    %277 = vmatpush2.msra.mxu0 0.0
    %278 = vmatprep.subr.mxu0 0.0
    %279 = vmatpush2.msra.mxu0 0.0
    %280 = vmatprep.mubr.f32.mxu0 0.0
    %281 = vmatmul.mubr.f32.gmra.mxu0 %v214
    %v282 = vpop.f32.mrf.mxu0
    %v283 = vadd.f32 %v210, %v282
    %v284 = vpop.f32.mrf.mxu0
    %285 = vdwg.mxu0
    %v286 = vlaneseq
    %v287 = vshrl.u32 %v286, 7
    %v288 = vsub.s32 4, %v287
    %v289 = vrot.slane %v68, %v288
    %v290 = vadd.f32 %v283, %v289
    %v291 = vmax.f32 %v290, 0.0
    %v292 = vrot.slane %v291, 4
    %v293 = vadd.f32 %v291, %v292
    %v294 = vrot.slane %v293, 2
    %v295 = vadd.f32 %v293, %v294
    %v296 = vrot.slane %v295, 1
    %v297 = vadd.f32 %v295, %v296
    %v298 = vmul.f32 %v297, 0.125
    %v299 = vsub.f32 %v291, %v298
    %v300 = vmul.f32 %v299, %v299
    %v301 = vrot.slane %v300, 4
    %v302 = vadd.f32 %v300, %v301
    %v303 = vrot.slane %v302, 2
    %v304 = vadd.f32 %v302, %v303
    %v305 = vrot.slane %v304, 1
    %v306 = vadd.f32 %v304, %v305
    %v307 = vmul.f32 %v306, 0.125
    %v308 = vadd.f32 %v307, 0.001
    %v309 = vrsqrt.pop %v308
    %v310 = vmul.f32 %v68, %v309
    %v311 = vlaneseq
    %v312 = vshrl.u32 %v311, 7
    %v313 = vsub.s32 5, %v312
    %v314 = vrot.slane %v310, %v313
    %v315 = vmul.f32 %v299, %v314
    %v316 = vlaneseq
    %v317 = vshrl.u32 %v316, 7
    %v318 = vsub.s32 6, %v317
    %v319 = vrot.slane %v68, %v318
    %v320 = vadd.f32 %v315, %v319
    %v321 = vld [vmem:[#allocation6 + $0x20] sm:$0xff]
    %v322 = vld [vmem:[#allocation6 + $0x28] sm:$0xff]
    %v323 = vld [vmem:[#allocation6 + $0x30] sm:$0xff]
    %v324 = vld [vmem:[#allocation6 + $0x38] sm:$0xff]
    %v325 = vld [vmem:[#allocation6 + $0x40] sm:$0xff]
    %v326 = vld [vmem:[#allocation6 + $0x48] sm:$0xff]
    %v327 = vld [vmem:[#allocation6 + $0x50] sm:$0xff]
    %v328 = vld [vmem:[#allocation6 + $0x58] sm:$0xff]
    %v329 = vld [vmem:[#allocation6 + $0x60] sm:$0xff]
    %v330 = vld [vmem:[#allocation6 + $0x68] sm:$0xff]
    %v331 = vld [vmem:[#allocation6 + $0x70] sm:$0xff]
    %v332 = vld [vmem:[#allocation6 + $0x78] sm:$0xff]
    %v333 = vld [vmem:[#allocation6 + $0x80] sm:$0xff]
    %v334 = vld [vmem:[#allocation6 + $0x88] sm:$0xff]
    %v335 = vld [vmem:[#allocation6 + $0x90] sm:$0xff]
    %v336 = vld [vmem:[#allocation6 + $0x98] sm:$0xff]
    %v337 = vlaneseq
    %v338 = vshrl.u32 %v337, 7
    %v339 = vsub.s32 7, %v338
    %v340 = vrot.slane %v68, %v339
    %341 = vmatprep.subr.mxu0 0.0
    %342 = vmatpush1.msra.mxu0 %v336
    %343 = vmatprep.subr.mxu0 0.0
    %344 = vmatpush1.msra.mxu0 %v335
    %345 = vmatprep.subr.mxu0 0.0
    %346 = vmatpush1.msra.mxu0 %v334
    %347 = vmatprep.subr.mxu0 0.0
    %348 = vmatpush1.msra.mxu0 %v333
    %349 = vmatprep.subr.mxu0 0.0
    %350 = vmatpush1.msra.mxu0 %v332
    %351 = vmatprep.subr.mxu0 0.0
    %352 = vmatpush1.msra.mxu0 %v331
    %353 = vmatprep.subr.mxu0 0.0
    %354 = vmatpush1.msra.mxu0 %v330
    %355 = vmatprep.subr.mxu0 0.0
    %356 = vmatpush1.msra.mxu0 %v329
    %357 = vmatprep.subr.mxu0 0.0
    %358 = vmatpush1.msra.mxu0 %v328
    %359 = vmatprep.subr.mxu0 0.0
    %360 = vmatpush1.msra.mxu0 %v327
    %361 = vmatprep.subr.mxu0 0.0
    %362 = vmatpush1.msra.mxu0 %v326
    %363 = vmatprep.subr.mxu0 0.0
    %364 = vmatpush1.msra.mxu0 %v325
    %365 = vmatprep.subr.mxu0 0.0
    %366 = vmatpush1.msra.mxu0 %v324
    %367 = vmatprep.subr.mxu0 0.0
    %368 = vmatpush1.msra.mxu0 %v323
    %369 = vmatprep.subr.mxu0 0.0
    %370 = vmatpush1.msra.mxu0 %v322
    %371 = vmatprep.subr.mxu0 0.0
    %372 = vmatpush1.msra.mxu0 %v321
    %373 = vmatprep.subr.mxu0 0.0
    %374 = vmatpush2.msra.mxu0 0.0
    %375 = vmatprep.subr.mxu0 0.0
    %376 = vmatpush2.msra.mxu0 0.0
    %377 = vmatprep.subr.mxu0 0.0
    %378 = vmatpush2.msra.mxu0 0.0
    %379 = vmatprep.subr.mxu0 0.0
    %380 = vmatpush2.msra.mxu0 0.0
    %381 = vmatprep.subr.mxu0 0.0
    %382 = vmatpush2.msra.mxu0 0.0
    %383 = vmatprep.subr.mxu0 0.0
    %384 = vmatpush2.msra.mxu0 0.0
    %385 = vmatprep.subr.mxu0 0.0
    %386 = vmatpush2.msra.mxu0 0.0
    %387 = vmatprep.subr.mxu0 0.0
    %388 = vmatpush2.msra.mxu0 0.0
    %389 = vmatprep.subr.mxu0 0.0
    %390 = vmatpush2.msra.mxu0 0.0
    %391 = vmatprep.subr.mxu0 0.0
    %392 = vmatpush2.msra.mxu0 0.0
    %393 = vmatprep.subr.mxu0 0.0
    %394 = vmatpush2.msra.mxu0 0.0
    %395 = vmatprep.subr.mxu0 0.0
    %396 = vmatpush2.msra.mxu0 0.0
    %397 = vmatprep.subr.mxu0 0.0
    %398 = vmatpush2.msra.mxu0 0.0
    %399 = vmatprep.subr.mxu0 0.0
    %400 = vmatpush2.msra.mxu0 0.0
    %401 = vmatprep.subr.mxu0 0.0
    %402 = vmatpush2.msra.mxu0 0.0
    %403 = vmatprep.subr.mxu0 0.0
    %404 = vmatpush2.msra.mxu0 0.0
    %405 = vmatprep.mubr.f32.mxu0 0.0
    %406 = vmatmul.mubr.f32.gmra.mxu0 %v320
    %v407 = vpop.f32.mrf.mxu0
    %v408 = vadd.f32 %v340, %v407
    %v409 = vpop.f32.mrf.mxu0
    %410 = vdwg.mxu0
    %v411 = vmax.f32 %v408, 0.0
    %v412 = vrot.slane %v411, 4
    %v413 = vadd.f32 %v411, %v412
    %v414 = vrot.slane %v413, 2
    %v415 = vadd.f32 %v413, %v414
    %v416 = vrot.slane %v415, 1
    %v417 = vadd.f32 %v415, %v416
    %v418 = vmul.f32 %v417, 0.125
    %v419 = vsub.f32 %v411, %v418
    %v420 = vmul.f32 %v419, %v419
    %v421 = vrot.slane %v420, 4
    %v422 = vadd.f32 %v420, %v421
    %v423 = vrot.slane %v422, 2
    %v424 = vadd.f32 %v422, %v423
    %v425 = vrot.slane %v424, 1
    %v426 = vadd.f32 %v424, %v425
    %v427 = vmul.f32 %v426, 0.125
    %v428 = vadd.f32 %v427, 0.001
    %v429 = vrsqrt.pop %v428
    %v430 = vmul.f32 %v69, %v429
    %v431 = vlaneseq
    %v432 = vshrl.u32 %v431, 7
    %v433 = vsub.s32 0, %v432
    %v434 = vrot.slane %v430, %v433
    %v435 = vmul.f32 %v419, %v434
    %v436 = vlaneseq
    %v437 = vshrl.u32 %v436, 7
    %v438 = vsub.s32 1, %v437
    %v439 = vrot.slane %v69, %v438
    %v440 = vadd.f32 %v435, %v439
    %v441 = vld [vmem:[#allocation6 + $0xa0] sm:$0xff]
    %v442 = vld [vmem:[#allocation6 + $0xa8] sm:$0xff]
    %v443 = vld [vmem:[#allocation6 + $0xb0] sm:$0xff]
    %v444 = vld [vmem:[#allocation6 + $0xb8] sm:$0xff]
    %v445 = vld [vmem:[#allocation6 + $0xc0] sm:$0xff]
    %v446 = vld [vmem:[#allocation6 + $0xc8] sm:$0xff]
    %v447 = vld [vmem:[#allocation6 + $0xd0] sm:$0xff]
    %v448 = vld [vmem:[#allocation6 + $0xd8] sm:$0xff]
    %v449 = vld [vmem:[#allocation6 + $0xe0] sm:$0xff]
    %v450 = vld [vmem:[#allocation6 + $0xe8] sm:$0xff]
    %v451 = vld [vmem:[#allocation6 + $0xf0] sm:$0xff]
    %v452 = vld [vmem:[#allocation6 + $0xf8] sm:$0xff]
    %v453 = vld [vmem:[#allocation6 + $0x100] sm:$0xff]
    %v454 = vld [vmem:[#allocation6 + $0x108] sm:$0xff]
    %v455 = vld [vmem:[#allocation6 + $0x110] sm:$0xff]
    %v456 = vld [vmem:[#allocation6 + $0x118] sm:$0xff]
    %v457 = vlaneseq
    %v458 = vshrl.u32 %v457, 7
    %v459 = vsub.s32 2, %v458
    %v460 = vrot.slane %v69, %v459
    %461 = vmatprep.subr.mxu0 0.0
    %462 = vmatpush1.msra.mxu0 %v456
    %463 = vmatprep.subr.mxu0 0.0
    %464 = vmatpush1.msra.mxu0 %v455
    %465 = vmatprep.subr.mxu0 0.0
    %466 = vmatpush1.msra.mxu0 %v454
    %467 = vmatprep.subr.mxu0 0.0
    %468 = vmatpush1.msra.mxu0 %v453
    %469 = vmatprep.subr.mxu0 0.0
    %470 = vmatpush1.msra.mxu0 %v452
    %471 = vmatprep.subr.mxu0 0.0
    %472 = vmatpush1.msra.mxu0 %v451
    %473 = vmatprep.subr.mxu0 0.0
    %474 = vmatpush1.msra.mxu0 %v450
    %475 = vmatprep.subr.mxu0 0.0
    %476 = vmatpush1.msra.mxu0 %v449
    %477 = vmatprep.subr.mxu0 0.0
    %478 = vmatpush1.msra.mxu0 %v448
    %479 = vmatprep.subr.mxu0 0.0
    %480 = vmatpush1.msra.mxu0 %v447
    %481 = vmatprep.subr.mxu0 0.0
    %482 = vmatpush1.msra.mxu0 %v446
    %483 = vmatprep.subr.mxu0 0.0
    %484 = vmatpush1.msra.mxu0 %v445
    %485 = vmatprep.subr.mxu0 0.0
    %486 = vmatpush1.msra.mxu0 %v444
    %487 = vmatprep.subr.mxu0 0.0
    %488 = vmatpush1.msra.mxu0 %v443
    %489 = vmatprep.subr.mxu0 0.0
    %490 = vmatpush1.msra.mxu0 %v442
    %491 = vmatprep.subr.mxu0 0.0
    %492 = vmatpush1.msra.mxu0 %v441
    %493 = vmatprep.subr.mxu0 0.0
    %494 = vmatpush2.msra.mxu0 0.0
    %495 = vmatprep.subr.mxu0 0.0
    %496 = vmatpush2.msra.mxu0 0.0
    %497 = vmatprep.subr.mxu0 0.0
    %498 = vmatpush2.msra.mxu0 0.0
    %499 = vmatprep.subr.mxu0 0.0
    %500 = vmatpush2.msra.mxu0 0.0
    %501 = vmatprep.subr.mxu0 0.0
    %502 = vmatpush2.msra.mxu0 0.0
    %503 = vmatprep.subr.mxu0 0.0
    %504 = vmatpush2.msra.mxu0 0.0
    %505 = vmatprep.subr.mxu0 0.0
    %506 = vmatpush2.msra.mxu0 0.0
    %507 = vmatprep.subr.mxu0 0.0
    %508 = vmatpush2.msra.mxu0 0.0
    %509 = vmatprep.subr.mxu0 0.0
    %510 = vmatpush2.msra.mxu0 0.0
    %511 = vmatprep.subr.mxu0 0.0
    %512 = vmatpush2.msra.mxu0 0.0
    %513 = vmatprep.subr.mxu0 0.0
    %514 = vmatpush2.msra.mxu0 0.0
    %515 = vmatprep.subr.mxu0 0.0
    %516 = vmatpush2.msra.mxu0 0.0
    %517 = vmatprep.subr.mxu0 0.0
    %518 = vmatpush2.msra.mxu0 0.0
    %519 = vmatprep.subr.mxu0 0.0
    %520 = vmatpush2.msra.mxu0 0.0
    %521 = vmatprep.subr.mxu0 0.0
    %522 = vmatpush2.msra.mxu0 0.0
    %523 = vmatprep.subr.mxu0 0.0
    %524 = vmatpush2.msra.mxu0 0.0
    %525 = vmatprep.mubr.f32.mxu0 0.0
    %526 = vmatmul.mubr.f32.gmra.mxu0 %v440
    %v527 = vpop.f32.mrf.mxu0
    %v528 = vadd.f32 %v460, %v527
    %v529 = vpop.f32.mrf.mxu0
    %530 = vdwg.mxu0
    %v531 = vmul.f32 %v528, %v528
    %533 = vrot.lane.b32.xlu0 %v531, 1
    %v534 = vpop.permute.xlu0 %533
    %v536 = vsub.f32 %v528, %v534
    %v537 = vmax.f32 %v536, 0.0
    %v538 = vadd.f32 %v537, 1e-15
    %v539 = vrsqrt.pop %v538
    %v540 = vmul.f32 %v538, %v539
    %vm541 = vcmp.eq.f32.partialorder %v538, inf
    %v542 = vsel %vm541, %v538, %v540
    %vm543 = vcmp.eq.f32.partialorder %v538, 0.0
    %v544 = vand.u32 %v538, 2147483648
    %v545 = vsel %vm543, %v544, %v542
    %v546 = vmul.f32 %v545, 1.5
    %548 = vrot.lane.b32.xlu0 %v546, 127
    %v549 = vpop.permute.xlu0 %548
    %v551 = vsub.f32 %v528, %v549
    %vm552 = vcmask 7168
    %553 = vst.msk [vmem:[%s4] sm:$0xff] %vm552, %v551
    // Predicated region
    $region34: #{critic_forward.1} parent=1 // pred_check
      _
    $region35: #{critic_forward.1} parent=1 // pred_check_branch
      %555 = sbr.rel (0) target = $region37
    $region36: #{critic_forward.1} parent=1 // pred_region
      _
    $region37: #{critic_forward.1} parent=1 // pred_fallthru
      _
    // Predicated region
    $region38: #{critic_forward.1} parent=1 // pred_check
      _
    $region39: #{critic_forward.1} parent=1 // pred_check_branch
      %557 = sbr.rel (0) target = $region41
    $region40: #{critic_forward.1} parent=1 // pred_region
      _
    $region41: #{critic_forward.1} parent=1 // pred_fallthru
      _
    %558 = vsyncpa [#allocation3], 1
    %559 = vsyncpa [#allocation5], 1
    %560 = vsyncpa [#allocation8], 1

</llo_original>
